<compile_context>
chip_gen: v7x
topology: tpu7x:2x2x1
jax: 0.10.0
libtpu: 0.0.40
codegen_flags: <defaults>
</compile_context>

<pallas_src>
import functools

import jax
import jax.numpy as jnp
from jax.experimental import pallas as pl
from jax.experimental.pallas import tpu as pltpu

# Fixed diffusion coefficients (coeff.a_s_cum[t], coeff.sigmas_cum[t],
# coeff.a_s[t+1], coeff.sigmas[t+1]) baked in as deterministic scalars.
A_CUM = 0.95
S_CUM = 0.31224989991991997   # sqrt(1 - A_CUM**2)
A_NXT = 0.99
S_NXT = 0.14106735979665885   # sqrt(1 - A_NXT**2)
LRELU_SLOPE = 0.2


def purifier_kernel(x_ref, zp_ref, w1t_ref, w2t_ref, b2_ref, out_ref, *, C):
    # Per-batch blocks (lane-dense layout, HW on the lane axis):
    #   x_ref  : (1, 3, C, HW)   packed [real; noise1; noise2]
    #   zp_ref : (1, CHID, 1)    hoisted latent conditioning (z@wz + bz + b1)
    #   w1t_ref: (CHID, C)       transposed 1x1-conv weight (C -> CHID)
    #   w2t_ref: (C, CHID)       transposed 1x1-conv weight (CHID -> C)
    #   b2_ref : (C, 1)
    #   out_ref: (1, C, HW)
    s = x_ref[0]                          # [3, C, HW]
    real = s[0]                           # [C, HW]
    n1 = s[1]                             # [C, HW]
    n2 = s[2]                             # [C, HW]

    # --- coeff.q_sample_pairs(real): elementwise diffusion sampling ---
    x1 = A_CUM * real + S_CUM * n1        # x_t
    x2 = A_NXT * x1 + S_NXT * n2          # x_{t+1}  (the generator input)

    # --- generator(x2, z), contracting over channels (N = HW = lane-dense) ---
    h = jnp.dot(w1t_ref[...], x2, preferred_element_type=jnp.float32)  # [CHID, HW]
    h = h + zp_ref[0]                                                  # + [CHID, 1]
    h = jnp.maximum(h, LRELU_SLOPE * h)                                # LeakyReLU(0.2)
    y = jnp.dot(w2t_ref[...], h, preferred_element_type=jnp.float32)   # [C, HW]
    y = y + b2_ref[...]                                                # + [C, 1]
    out_ref[0] = jnp.tanh(y).astype(out_ref.dtype)


def purifier_forward(real_nchw, noise1_nchw, noise2_nchw, z, params):
    """real_nchw: [B, C, H, W] float32 (PyTorch layout). Returns [B, C, H, W]."""
    B, C, H, W = real_nchw.shape
    HW = H * W
    wz, bz, w1, b1, w2, b2 = params
    nz, chid = wz.shape

    # NCHW -> [B, C, HW] is a free reshape (no transpose, no data movement).
    real_r = real_nchw.reshape(B, C, HW)
    n1_r = noise1_nchw.reshape(B, C, HW)
    n2_r = noise2_nchw.reshape(B, C, HW)
    # Pack the three per-batch streams so each grid step issues one DMA.
    x_stack = jnp.stack([real_r, n1_r, n2_r], axis=1)        # [B, 3, C, HW]

    # Hoisted latent projection: one batched matmul outside the kernel.
    zp = jnp.dot(z, wz) + bz + b1                            # [B, CHID]
    zp_col = zp[:, :, None]                                  # [B, CHID, 1]

    # Transposed weights so the 1x1 convs contract over C with HW on lanes.
    w1t = jnp.transpose(w1)                                  # [CHID, C]
    w2t = jnp.transpose(w2)                                  # [C, CHID]
    b2_col = b2.reshape(C, 1)                                # [C, 1]

    x_spec = pl.BlockSpec((1, 3, C, HW), lambda b: (b, 0, 0, 0))
    zp_spec = pl.BlockSpec((1, chid, 1), lambda b: (b, 0, 0))
    out_spec = pl.BlockSpec((1, C, HW), lambda b: (b, 0, 0))

    def full2(shape):
        return pl.BlockSpec(shape, lambda b: (0, 0))

    out_rows = pl.pallas_call(
        functools.partial(purifier_kernel, C=C),
        out_shape=jax.ShapeDtypeStruct((B, C, HW), jnp.float32),
        grid=(B,),
        in_specs=[x_spec, zp_spec,
                  full2((chid, C)), full2((C, chid)), full2((C, 1))],
        out_specs=out_spec,
        compiler_params=pltpu.CompilerParams(
            dimension_semantics=("parallel",)),
    )(x_stack, zp_col, w1t, w2t, b2_col)

    # [B, C, HW] -> [B, C, H, W] is again a free reshape (already NCHW order).
    return out_rows.reshape(B, C, H, W)


if __name__ == "__main__":
    B, C, H, W = 2, 4, 16, 16     # small NCHW image batch
    NZ, CHID = 32, 32             # args.nz and generator hidden width

    key = jax.random.PRNGKey(0)
    ks = jax.random.split(key, 8)

    real = jax.random.normal(ks[0], (B, C, H, W), jnp.float32)
    # q_sample_pairs noise (torch.randn_like(real) twice) and latent z,
    # generated deterministically in the wrapper instead of inside forward().
    noise1 = jax.random.normal(ks[1], (B, C, H, W), jnp.float32)
    noise2 = jax.random.normal(ks[2], (B, C, H, W), jnp.float32)
    latent_z = jax.random.normal(ks[3], (B, NZ), jnp.float32)

    # Deterministic synthetic generator parameters.
    wz = 0.1 * jax.random.normal(ks[4], (NZ, CHID), jnp.float32)
    bz = jnp.zeros((1, CHID), jnp.float32)
    w1 = 0.1 * jax.random.normal(ks[5], (C, CHID), jnp.float32)
    b1 = jnp.zeros((1, CHID), jnp.float32)
    w2 = 0.1 * jax.random.normal(ks[6], (CHID, C), jnp.float32)
    b2 = jnp.zeros((1, C), jnp.float32)

    out = purifier_forward(real, noise1, noise2, latent_z,
                           (wz, bz, w1, b1, w2, b2))
    out = jax.block_until_ready(out)
    assert out.shape == (B, C, H, W) and out.dtype == jnp.float32
    print("KERNEL_OK")
</pallas_src>

<mosaic_0001>
module attributes {stable_mosaic.version = 11 : i64} {
  func.func @purifier_kernel(%arg0: i32, %arg1: memref<1x3x4x256xf32, #tpu.memory_space<vmem>>, %arg2: memref<1x32x1xf32, #tpu.memory_space<vmem>>, %arg3: memref<32x4xf32, #tpu.memory_space<vmem>>, %arg4: memref<4x32xf32, #tpu.memory_space<vmem>>, %arg5: memref<4x1xf32, #tpu.memory_space<vmem>>, %arg6: memref<1x4x256xf32, #tpu.memory_space<vmem>>) attributes {dimension_semantics = [#tpu.dimension_semantics<parallel>], iteration_bounds = array<i64: 2>, scalar_prefetch = 0 : i64, scratch_operands = 0 : i64, tpu.core_type = #tpu.core_type<tc>, window_params = [{transform_indices = @transform_0, window_bounds = array<i64: 1, 3, 4, 256>}, {transform_indices = @transform_1, window_bounds = array<i64: 1, 32, 1>}, {pipeline_mode = #tpu.pipeline_mode<synchronous>, transform_indices = @transform_2, window_bounds = array<i64: 32, 4>}, {pipeline_mode = #tpu.pipeline_mode<synchronous>, transform_indices = @transform_3, window_bounds = array<i64: 4, 32>}, {pipeline_mode = #tpu.pipeline_mode<synchronous>, transform_indices = @transform_4, window_bounds = array<i64: 4, 1>}, {transform_indices = @transform_5, window_bounds = array<i64: 1, 4, 256>}]} {
    %c0 = arith.constant 0 : index
    %c0_0 = arith.constant 0 : index
    %c0_1 = arith.constant 0 : index
    %c0_2 = arith.constant 0 : index
    %0 = vector.load %arg1[%c0, %c0_0, %c0_1, %c0_2] : memref<1x3x4x256xf32, #tpu.memory_space<vmem>>, vector<1x3x4x256xf32>
    %1 = vector.shape_cast %0 : vector<1x3x4x256xf32> to vector<3x4x256xf32>
    %2 = vector.extract_strided_slice %1 {offsets = [0, 0, 0], sizes = [1, 4, 256], strides = [1, 1, 1]} : vector<3x4x256xf32> to vector<1x4x256xf32>
    %3 = vector.shape_cast %2 : vector<1x4x256xf32> to vector<4x256xf32>
    %4 = vector.extract_strided_slice %1 {offsets = [1, 0, 0], sizes = [1, 4, 256], strides = [1, 1, 1]} : vector<3x4x256xf32> to vector<1x4x256xf32>
    %5 = vector.shape_cast %4 : vector<1x4x256xf32> to vector<4x256xf32>
    %6 = vector.extract_strided_slice %1 {offsets = [2, 0, 0], sizes = [1, 4, 256], strides = [1, 1, 1]} : vector<3x4x256xf32> to vector<1x4x256xf32>
    %7 = vector.shape_cast %6 : vector<1x4x256xf32> to vector<4x256xf32>
    %cst = arith.constant 0.949999988 : f32
    %8 = vector.broadcast %cst : f32 to vector<4x256xf32>
    %9 = arith.mulf %8, %3 : vector<4x256xf32>
    %cst_3 = arith.constant 0.312249899 : f32
    %10 = vector.broadcast %cst_3 : f32 to vector<4x256xf32>
    %11 = arith.mulf %10, %5 : vector<4x256xf32>
    %12 = arith.addf %9, %11 : vector<4x256xf32>
    %cst_4 = arith.constant 9.900000e-01 : f32
    %13 = vector.broadcast %cst_4 : f32 to vector<4x256xf32>
    %14 = arith.mulf %13, %12 : vector<4x256xf32>
    %cst_5 = arith.constant 0.141067356 : f32
    %15 = vector.broadcast %cst_5 : f32 to vector<4x256xf32>
    %16 = arith.mulf %15, %7 : vector<4x256xf32>
    %17 = arith.addf %14, %16 : vector<4x256xf32>
    %c0_6 = arith.constant 0 : index
    %c0_7 = arith.constant 0 : index
    %18 = vector.load %arg3[%c0_6, %c0_7] : memref<32x4xf32, #tpu.memory_space<vmem>>, vector<32x4xf32>
    %cst_8 = arith.constant dense<0.000000e+00> : vector<32x256xf32>
    %19 = tpu.matmul %18, %17, %cst_8 {dimension_numbers = #tpu.dot_dimension_numbers<[1], [0], [0], [1], [0, 0, 1, 1], [], []>} : vector<32x4xf32>, vector<4x256xf32>, vector<32x256xf32> -> vector<32x256xf32>
    %c0_9 = arith.constant 0 : index
    %c0_10 = arith.constant 0 : index
    %c0_11 = arith.constant 0 : index
    %20 = vector.load %arg2[%c0_9, %c0_10, %c0_11] : memref<1x32x1xf32, #tpu.memory_space<vmem>>, vector<1x32x1xf32>
    %21 = vector.shape_cast %20 : vector<1x32x1xf32> to vector<32x1xf32>
    %22 = vector.broadcast %21 : vector<32x1xf32> to vector<32x256xf32>
    %23 = arith.addf %19, %22 : vector<32x256xf32>
    %cst_12 = arith.constant 2.000000e-01 : f32
    %24 = vector.broadcast %cst_12 : f32 to vector<32x256xf32>
    %25 = arith.mulf %24, %23 : vector<32x256xf32>
    %26 = arith.maximumf %23, %25 : vector<32x256xf32>
    %c0_13 = arith.constant 0 : index
    %c0_14 = arith.constant 0 : index
    %27 = vector.load %arg4[%c0_13, %c0_14] : memref<4x32xf32, #tpu.memory_space<vmem>>, vector<4x32xf32>
    %cst_15 = arith.constant dense<0.000000e+00> : vector<4x256xf32>
    %28 = tpu.matmul %27, %26, %cst_15 {dimension_numbers = #tpu.dot_dimension_numbers<[1], [0], [0], [1], [0, 0, 1, 1], [], []>} : vector<4x32xf32>, vector<32x256xf32>, vector<4x256xf32> -> vector<4x256xf32>
    %c0_16 = arith.constant 0 : index
    %c0_17 = arith.constant 0 : index
    %29 = vector.load %arg5[%c0_16, %c0_17] : memref<4x1xf32, #tpu.memory_space<vmem>>, vector<4x1xf32>
    %30 = vector.broadcast %29 : vector<4x1xf32> to vector<4x256xf32>
    %31 = arith.addf %28, %30 : vector<4x256xf32>
    %32 = math.tanh %31 : vector<4x256xf32>
    %c0_18 = arith.constant 0 : index
    %c0_19 = arith.constant 0 : index
    %c0_20 = arith.constant 0 : index
    %33 = vector.load %arg6[%c0_18, %c0_19, %c0_20] : memref<1x4x256xf32, #tpu.memory_space<vmem>>, vector<1x4x256xf32>
    %34 = vector.shape_cast %33 : vector<1x4x256xf32> to vector<4x256xf32>
    %35 = vector.shape_cast %32 : vector<4x256xf32> to vector<1x4x256xf32>
    tpu.vector_store %arg6[%c0_18, %c0_19, %c0_20], %35 {strides = array<i32>} : memref<1x4x256xf32, #tpu.memory_space<vmem>>, vector<1x4x256xf32>,
    return
  }
  func.func @transform_0(%arg0: i32) -> (i32, i32, i32, i32) {
    %c0_i32 = arith.constant 0 : i32
    %c0_i32_0 = arith.constant 0 : i32
    %c0_i32_1 = arith.constant 0 : i32
    %c0_i32_2 = arith.constant 0 : i32
    return %arg0, %c0_i32, %c0_i32_0, %c0_i32_1 : i32, i32, i32, i32
  }
  func.func @transform_1(%arg0: i32) -> (i32, i32, i32) {
    %c0_i32 = arith.constant 0 : i32
    %c0_i32_0 = arith.constant 0 : i32
    %c0_i32_1 = arith.constant 0 : i32
    return %arg0, %c0_i32, %c0_i32_0 : i32, i32, i32
  }
  func.func @transform_2(%arg0: i32) -> (i32, i32) {
    %c0_i32 = arith.constant 0 : i32
    %c0_i32_0 = arith.constant 0 : i32
    %c0_i32_1 = arith.constant 0 : i32
    return %c0_i32, %c0_i32_0 : i32, i32
  }
  func.func @transform_3(%arg0: i32) -> (i32, i32) {
    %c0_i32 = arith.constant 0 : i32
    %c0_i32_0 = arith.constant 0 : i32
    %c0_i32_1 = arith.constant 0 : i32
    return %c0_i32, %c0_i32_0 : i32, i32
  }
  func.func @transform_4(%arg0: i32) -> (i32, i32) {
    %c0_i32 = arith.constant 0 : i32
    %c0_i32_0 = arith.constant 0 : i32
    %c0_i32_1 = arith.constant 0 : i32
    return %c0_i32, %c0_i32_0 : i32, i32
  }
  func.func @transform_5(%arg0: i32) -> (i32, i32, i32) {
    %c0_i32 = arith.constant 0 : i32
    %c0_i32_0 = arith.constant 0 : i32
    %c0_i32_1 = arith.constant 0 : i32
    return %arg0, %c0_i32, %c0_i32_0 : i32, i32, i32
  }
}

</mosaic_0001>

<llo_original>
// kernel: tpu_custom_call.1
$region0: #{tpu_custom_call.1}
  #allocation0 [shape = 'u32[]', space=smem, size = 0x4, offset = 0x4, fixed_abs, tag = 'smem constant byte address 0x4 - core index']
  #allocation1 [shape = 'u32[144,128]{1,0:T(1,128)}', space=vmem, size = 0x12000, scoped, tag = 'internal scratch']
  %s0 = inlined_call_operand.vmem [shape: f32[2,3,4,256], index: 0, kind: input, shape index: {}]
  %s1 = inlined_call_operand.vmem [shape: f32[2,32,1], index: 1, kind: input, shape index: {}]
  %s2 = inlined_call_operand.vmem [shape: f32[32,4], index: 2, kind: input, shape index: {}]
  %s3 = inlined_call_operand.vmem [shape: f32[4,32], index: 3, kind: input, shape index: {}]
  %s4 = inlined_call_operand.vmem [shape: f32[4,1], index: 4, kind: input, shape index: {}]
  %s5 = inlined_call_operand.hbm [shape: f32[2,4,256], index: 5, kind: output, shape index: {}]
  %s6 = sld [smem:[#allocation0]]
  $region53: #{tpu_custom_call.1} parent=0
    _
  %s8 = ssub.s32 1, %s6
  %s9 = scalar_select 0, %s8, %s6
  $region1: #{tpu_custom_call.1} parent=0
    #allocation2 [shape = 'u8[8192]{0}', space=vmem, size = 0x2000, scoped, tag = 'output window, operand 0']
    #allocation3 [shape = 's32[2]{0}', space=sflag, size = 0x8, scoped, tag = 'scoped memory for tpu_custom_call.1']
    %10 = vsyncpa [#allocation3], 0
    %s11 = scalar_lea.sflag [#allocation3], 1
    %12 = vsyncpa %s11, 0
    loop: start=0, step=1, limit=4
    $region2: #{tpu_custom_call.1} parent=1 // loop_pre_header
      _
    $region3: #{tpu_custom_call.1} parent=1 // loop_header
      %s14 = sphi 0, %s18
      %p15 = scmp.ge.s32.totalorder %s14, 4
      %s24 = sphi 0, %s26
      %s27 = sphi 0, %s24
      %s28 = sphi 0, %s27
      %s44 = sphi 0, %s28
      %s50 = sphi 0, %s52
      %s53 = sphi 0, %s50
      %s54 = sphi 0, %s53
      %s70 = sphi 0, %s54
      %s74 = sphi 0, %s74
      %s76 = sphi 0, %s74
      %s77 = sphi 0, %s76
      %s91 = sphi 0, %s77
      %s95 = sphi 0, %s95
      %s97 = sphi 0, %s95
      %s98 = sphi 0, %s97
      %s112 = sphi 0, %s98
      %s116 = sphi 0, %s116
      %s118 = sphi 0, %s116
      %s119 = sphi 0, %s118
      %s133 = sphi 0, %s119
      %s139 = sphi 0, %s141
      %s142 = sphi 0, %s139
      %s143 = sphi 0, %s142
      %s159 = sphi 0, %s143
    $region4: #{tpu_custom_call.1} parent=1 // loop_header_branch
      %17 = sbr.rel (%p15) target = $region8
    $region5: #{tpu_custom_call.1} parent=1 // loop_body
      %s19 = ssub.s32 %s14, 1
      %s20 = ssub.s32 %s14, 2
      %s21 = sadd.s32 %s14, 1
      %s22 = ssub.s32 %s14, %s21
      %p23 = scmp.eq.s32.totalorder %s22, 0
      %s25 = sadd.s32 %s24, 1
      %s26 = scalar_select %p23, %s24, %s25
      %p29 = pneg %p23
      %p30 = scmp.eq.s32.totalorder %s14, 1
      %p31 = por %p29, %p30
      %p32 = scmp.ne.s32.totalorder %s24, %s27
      %p33 = scmp.eq.s32.totalorder %s14, 0
      %p34 = por %p32, %p33
      %p35 = scmp.ne.s32.totalorder %s24, %s27
      %p36 = scmp.eq.s32.totalorder %s19, 1
      %p37 = por %p35, %p36
      %p38 = scmp.ne.s32.totalorder %s27, %s28
      %p39 = scmp.eq.s32.totalorder %s19, 0
      %p40 = por %p38, %p39
      %p41 = scmp.ne.s32.totalorder %s27, %s28
      %p42 = scmp.eq.s32.totalorder %s20, 1
      %p43 = por %p41, %p42
      %p45 = scmp.ne.s32.totalorder %s28, %s44
      %p46 = scmp.eq.s32.totalorder %s20, 0
      %p47 = por %p45, %p46
      %s48 = ssub.s32 %s14, %s21
      %p49 = scmp.eq.s32.totalorder %s48, 0
      %s51 = sadd.s32 %s50, 1
      %s52 = scalar_select %p49, %s50, %s51
      %p55 = pneg %p49
      %p56 = scmp.eq.s32.totalorder %s14, 1
      %p57 = por %p55, %p56
      %p58 = scmp.ne.s32.totalorder %s50, %s53
      %p59 = scmp.eq.s32.totalorder %s14, 0
      %p60 = por %p58, %p59
      %p61 = scmp.ne.s32.totalorder %s50, %s53
      %p62 = scmp.eq.s32.totalorder %s19, 1
      %p63 = por %p61, %p62
      %p64 = scmp.ne.s32.totalorder %s53, %s54
      %p65 = scmp.eq.s32.totalorder %s19, 0
      %p66 = por %p64, %p65
      %p67 = scmp.ne.s32.totalorder %s53, %s54
      %p68 = scmp.eq.s32.totalorder %s20, 1
      %p69 = por %p67, %p68
      %p71 = scmp.ne.s32.totalorder %s54, %s70
      %p72 = scmp.eq.s32.totalorder %s20, 0
      %p73 = por %p71, %p72
      %s75 = sadd.s32 %s74, 1
      %p78 = scmp.eq.s32.totalorder %s14, 1
      %p79 = scmp.ne.s32.totalorder %s74, %s76
      %p80 = scmp.eq.s32.totalorder %s14, 0
      %p81 = por %p79, %p80
      %p82 = scmp.ne.s32.totalorder %s74, %s76
      %p83 = scmp.eq.s32.totalorder %s19, 1
      %p84 = por %p82, %p83
      %p85 = scmp.ne.s32.totalorder %s76, %s77
      %p86 = scmp.eq.s32.totalorder %s19, 0
      %p87 = por %p85, %p86
      %p88 = scmp.ne.s32.totalorder %s76, %s77
      %p89 = scmp.eq.s32.totalorder %s20, 1
      %p90 = por %p88, %p89
      %p92 = scmp.ne.s32.totalorder %s77, %s91
      %p93 = scmp.eq.s32.totalorder %s20, 0
      %p94 = por %p92, %p93
      %s96 = sadd.s32 %s95, 1
      %p99 = scmp.eq.s32.totalorder %s14, 1
      %p100 = scmp.ne.s32.totalorder %s95, %s97
      %p101 = scmp.eq.s32.totalorder %s14, 0
      %p102 = por %p100, %p101
      %p103 = scmp.ne.s32.totalorder %s95, %s97
      %p104 = scmp.eq.s32.totalorder %s19, 1
      %p105 = por %p103, %p104
      %p106 = scmp.ne.s32.totalorder %s97, %s98
      %p107 = scmp.eq.s32.totalorder %s19, 0
      %p108 = por %p106, %p107
      %p109 = scmp.ne.s32.totalorder %s97, %s98
      %p110 = scmp.eq.s32.totalorder %s20, 1
      %p111 = por %p109, %p110
      %p113 = scmp.ne.s32.totalorder %s98, %s112
      %p114 = scmp.eq.s32.totalorder %s20, 0
      %p115 = por %p113, %p114
      %s117 = sadd.s32 %s116, 1
      %p120 = scmp.eq.s32.totalorder %s14, 1
      %p121 = scmp.ne.s32.totalorder %s116, %s118
      %p122 = scmp.eq.s32.totalorder %s14, 0
      %p123 = por %p121, %p122
      %p124 = scmp.ne.s32.totalorder %s116, %s118
      %p125 = scmp.eq.s32.totalorder %s19, 1
      %p126 = por %p124, %p125
      %p127 = scmp.ne.s32.totalorder %s118, %s119
      %p128 = scmp.eq.s32.totalorder %s19, 0
      %p129 = por %p127, %p128
      %p130 = scmp.ne.s32.totalorder %s118, %s119
      %p131 = scmp.eq.s32.totalorder %s20, 1
      %p132 = por %p130, %p131
      %p134 = scmp.ne.s32.totalorder %s119, %s133
      %p135 = scmp.eq.s32.totalorder %s20, 0
      %p136 = por %p134, %p135
      %s137 = ssub.s32 %s14, %s21
      %p138 = scmp.eq.s32.totalorder %s137, 0
      %s140 = sadd.s32 %s139, 1
      %s141 = scalar_select %p138, %s139, %s140
      %p144 = pneg %p138
      %p145 = scmp.eq.s32.totalorder %s14, 1
      %p146 = por %p144, %p145
      %p147 = scmp.ne.s32.totalorder %s139, %s142
      %p148 = scmp.eq.s32.totalorder %s14, 0
      %p149 = por %p147, %p148
      %p150 = scmp.ne.s32.totalorder %s139, %s142
      %p151 = scmp.eq.s32.totalorder %s19, 1
      %p152 = por %p150, %p151
      %p153 = scmp.ne.s32.totalorder %s142, %s143
      %p154 = scmp.eq.s32.totalorder %s19, 0
      %p155 = por %p153, %p154
      %p156 = scmp.ne.s32.totalorder %s142, %s143
      %p157 = scmp.eq.s32.totalorder %s20, 1
      %p158 = por %p156, %p157
      %p160 = scmp.ne.s32.totalorder %s143, %s159
      %p161 = scmp.eq.s32.totalorder %s20, 0
      %p162 = por %p160, %p161
      %p163 = scmp.le.s32.totalorder 1, %s14
      %p164 = scmp.lt.s32.totalorder %s14, 3
      %p165 = pnand %p163, %p164
      %p166 = pneg %p165
      // Predicated region
      $region9: #{tpu_custom_call.1} parent=5 // pred_check
        _
      $region10: #{tpu_custom_call.1} parent=5 // pred_check_branch
        %168 = sbr.rel (%p165) target = $region12
      $region11: #{tpu_custom_call.1} parent=5 // pred_region
        %s169 = ssub.s32 %s14, 1
        // Predicated region
        $region13: #{tpu_custom_call.1} parent=11 // pred_check
          %p170 = pneg %p87
        $region14: #{tpu_custom_call.1} parent=11 // pred_check_branch
          %172 = sbr.rel (%p170) target = $region16
        $region15: #{tpu_custom_call.1} parent=11 // pred_region
          _
        $region16: #{tpu_custom_call.1} parent=11 // pred_fallthru
          _
        // Predicated region
        $region17: #{tpu_custom_call.1} parent=11 // pred_check
          %p173 = pneg %p108
        $region18: #{tpu_custom_call.1} parent=11 // pred_check_branch
          %175 = sbr.rel (%p173) target = $region20
        $region19: #{tpu_custom_call.1} parent=11 // pred_region
          _
        $region20: #{tpu_custom_call.1} parent=11 // pred_fallthru
          _
        // Predicated region
        $region21: #{tpu_custom_call.1} parent=11 // pred_check
          %p176 = pneg %p129
        $region22: #{tpu_custom_call.1} parent=11 // pred_check_branch
          %178 = sbr.rel (%p176) target = $region24
        $region23: #{tpu_custom_call.1} parent=11 // pred_region
          _
        $region24: #{tpu_custom_call.1} parent=11 // pred_fallthru
          _
      $region12: #{tpu_custom_call.1} parent=5 // pred_fallthru
        _
      %p179 = scmp.lt.s32.totalorder %s14, 2
      // Predicated region
      $region25: #{tpu_custom_call.1} parent=5 // pred_check
        %p180 = pneg %p179
      $region26: #{tpu_custom_call.1} parent=5 // pred_check_branch
        %182 = sbr.rel (%p180) target = $region28
      $region27: #{tpu_custom_call.1} parent=5 // pred_region
        // Predicated region
        $region29: #{tpu_custom_call.1} parent=27 // pred_check
          %p183 = pneg %p34
        $region30: #{tpu_custom_call.1} parent=27 // pred_check_branch
          %185 = sbr.rel (%p183) target = $region32
        $region31: #{tpu_custom_call.1} parent=27 // pred_region
          %p186 = scmp.lt.s32.totalorder %s14, 1
          %s187 = scalar_select %p186, %s14, 1
          %s188 = smul.addr %s187, 6
          %s189 = smul.addr %s188, 4
          %s190 = scalar_lea.vmem %s0, %s189
        $region32: #{tpu_custom_call.1} parent=27 // pred_fallthru
          _
        // Predicated region
        $region33: #{tpu_custom_call.1} parent=27 // pred_check
          %p191 = pneg %p60
        $region34: #{tpu_custom_call.1} parent=27 // pred_check_branch
          %193 = sbr.rel (%p191) target = $region36
        $region35: #{tpu_custom_call.1} parent=27 // pred_region
          %p194 = scmp.lt.s32.totalorder %s14, 1
          %s195 = scalar_select %p194, %s14, 1
          %s196 = smul.addr %s195, 4
          %s197 = smul.addr %s196, 8
          %s198 = scalar_lea.vmem %s1, %s197
        $region36: #{tpu_custom_call.1} parent=27 // pred_fallthru
          _
      $region28: #{tpu_custom_call.1} parent=5 // pred_fallthru
        _
      %p199 = scmp.le.s32.totalorder 1, %s14
      %p200 = scmp.lt.s32.totalorder %s14, 3
      %p201 = pnand %p199, %p200
      %p202 = pneg %p201
      // Predicated region
      $region37: #{tpu_custom_call.1} parent=5 // pred_check
        _
      $region38: #{tpu_custom_call.1} parent=5 // pred_check_branch
        %204 = sbr.rel (%p201) target = $region40
      $region39: #{tpu_custom_call.1} parent=5 // pred_region
        %s205 = ssub.s32 %s14, 1
        %p206 = scmp.lt.s32.totalorder %s19, 1
        %s207 = scalar_select %p206, %s19, 1
        %s208 = smul.addr %s207, 6
        %s209 = smul.addr %s208, 4
        %s210 = scalar_lea.vmem %s0, %s209
        %p211 = pneg %p40
        %p212 = pneg %p37
        %p213 = scmp.lt.s32.totalorder %s19, 1
        %s214 = scalar_select %p213, %s19, 1
        %s215 = smul.addr %s214, 4
        %s216 = smul.addr %s215, 8
        %s217 = scalar_lea.vmem %s1, %s216
        %p218 = pneg %p66
        %p219 = pneg %p63
        %p220 = pneg %p87
        %p221 = pneg %p84
        %p222 = pneg %p108
        %p223 = pneg %p105
        %p224 = pneg %p129
        %p225 = pneg %p126
        %p226 = pneg %p155
        %p227 = pneg %p152
        %s228 = sand.u32 %s142, 1
        %s229 = scalar_lea.sflag [#allocation3], %s228
        %s230 = sand.u32 %s142, 1
        %s231 = smul.addr %s230, 8
        %s232 = scalar_lea.vmem [#allocation2], %s231
        %p233 = scmp.lt.s32.totalorder %s19, 1
        %s234 = scalar_select %p233, %s19, 1
        %s235 = smul.addr %s234, 6
        %s236 = smul.addr %s235, 4
        %s237 = scalar_lea.vmem %s0, %s236
        %p238 = scmp.lt.s32.totalorder %s19, 1
        %s239 = scalar_select %p238, %s19, 1
        %s240 = smul.addr %s239, 4
        %s241 = smul.addr %s240, 8
        %s242 = scalar_lea.vmem %s1, %s241
        %v243 = vld [vmem:[%s237] sm:$0xff]
        %v244 = vld [vmem:[%s237 + $0x8] sm:$0xff]
        %v245 = vld [vmem:[%s237 + $0x10] sm:$0xff]
        %v246 = vmul.f32 %v243, 0.95
        %v247 = vmul.f32 %v244, 0.3122499
        %v248 = vadd.f32 %v246, %v247
        %v249 = vmul.f32 %v248, 0.99
        %v250 = vmul.f32 %v245, 0.14106736
        %v251 = vadd.f32 %v249, %v250
        %v252 = vld [vmem:[%s2] sm:$0xff]
        %v253 = vld [vmem:[%s2 + $0x8] sm:$0xff]
        %v254 = vld [vmem:[%s2 + $0x10] sm:$0xff]
        %v255 = vld [vmem:[%s2 + $0x18] sm:$0xff]
        %v256 = vld [vmem:[%s242] sm:$0xff]
        %v257 = vld [vmem:[%s242 + $0x8] sm:$0xff]
        %v258 = vld [vmem:[%s242 + $0x10] sm:$0xff]
        %v259 = vld [vmem:[%s242 + $0x18] sm:$0xff]
        %261 = vset.pattern.permute.xlu0 0
        %262 = vperm.xlu0 %261, %v256
        %v263 = vpop.permute.xlu0 %262
        %266 = vset.pattern.permute.xlu0 0
        %267 = vperm.xlu0 %266, %v257
        %v268 = vpop.permute.xlu0 %267
        %271 = vset.pattern.permute.xlu0 0
        %272 = vperm.xlu0 %271, %v258
        %v273 = vpop.permute.xlu0 %272
        %276 = vset.pattern.permute.xlu0 0
        %277 = vperm.xlu0 %276, %v259
        %v278 = vpop.permute.xlu0 %277
        %v281 = vcombine.high %v251, %v251
        %vm282 = vcmask 31744
        %v284 = vsel %vm282, %v252, 0
        %v287 = vsel %vm282, %v253, 0
        %v290 = vsel %vm282, %v254, 0
        %v293 = vsel %vm282, %v255, 0
        %vm295 = vcmask 1043456
        %v296 = vsel %vm295, %v251, 0
        %v298 = vsel %vm295, %v281, 0
        %300 = vmatprep.subr.mxu0 %v298
        %301 = vmatpush1.msra.mxu0 %v296
        %302 = vmatprep.subr.mxu0 0.0
        %303 = vmatpush1.msra.mxu0 0.0
        %304 = vmatprep.subr.mxu0 0.0
        %305 = vmatpush1.msra.mxu0 0.0
        %306 = vmatprep.subr.mxu0 0.0
        %307 = vmatpush1.msra.mxu0 0.0
        %308 = vmatprep.subr.mxu0 0.0
        %309 = vmatpush1.msra.mxu0 0.0
        %310 = vmatprep.subr.mxu0 0.0
        %311 = vmatpush1.msra.mxu0 0.0
        %312 = vmatprep.subr.mxu0 0.0
        %313 = vmatpush1.msra.mxu0 0.0
        %314 = vmatprep.subr.mxu0 0.0
        %315 = vmatpush1.msra.mxu0 0.0
        %316 = vmatprep.subr.mxu0 0.0
        %317 = vmatpush1.msra.mxu0 0.0
        %318 = vmatprep.subr.mxu0 0.0
        %319 = vmatpush1.msra.mxu0 0.0
        %320 = vmatprep.subr.mxu0 0.0
        %321 = vmatpush1.msra.mxu0 0.0
        %322 = vmatprep.subr.mxu0 0.0
        %323 = vmatpush1.msra.mxu0 0.0
        %324 = vmatprep.subr.mxu0 0.0
        %325 = vmatpush1.msra.mxu0 0.0
        %326 = vmatprep.subr.mxu0 0.0
        %327 = vmatpush1.msra.mxu0 0.0
        %328 = vmatprep.subr.mxu0 0.0
        %329 = vmatpush1.msra.mxu0 0.0
        %330 = vmatprep.subr.mxu0 0.0
        %331 = vmatpush1.msra.mxu0 0.0
        %332 = vmatprep.subr.mxu0 0.0
        %333 = vmatpush1.msra.mxu0 0.0
        %334 = vmatprep.subr.mxu0 0.0
        %335 = vmatpush1.msra.mxu0 0.0
        %336 = vmatprep.subr.mxu0 0.0
        %337 = vmatpush1.msra.mxu0 0.0
        %338 = vmatprep.subr.mxu0 0.0
        %339 = vmatpush1.msra.mxu0 0.0
        %340 = vmatprep.subr.mxu0 0.0
        %341 = vmatpush1.msra.mxu0 0.0
        %342 = vmatprep.subr.mxu0 0.0
        %343 = vmatpush1.msra.mxu0 0.0
        %344 = vmatprep.subr.mxu0 0.0
        %345 = vmatpush1.msra.mxu0 0.0
        %346 = vmatprep.subr.mxu0 0.0
        %347 = vmatpush1.msra.mxu0 0.0
        %348 = vmatprep.subr.mxu0 0.0
        %349 = vmatpush1.msra.mxu0 0.0
        %350 = vmatprep.subr.mxu0 0.0
        %351 = vmatpush1.msra.mxu0 0.0
        %352 = vmatprep.subr.mxu0 0.0
        %353 = vmatpush1.msra.mxu0 0.0
        %354 = vmatprep.subr.mxu0 0.0
        %355 = vmatpush1.msra.mxu0 0.0
        %356 = vmatprep.subr.mxu0 0.0
        %357 = vmatpush1.msra.mxu0 0.0
        %358 = vmatprep.subr.mxu0 0.0
        %359 = vmatpush1.msra.mxu0 0.0
        %360 = vmatprep.subr.mxu0 0.0
        %361 = vmatpush1.msra.mxu0 0.0
        %362 = vmatprep.subr.mxu0 0.0
        %363 = vmatpush1.msra.mxu0 0.0
        %364 = vmatprep.mubr.f32.mxu0 0.0
        %365 = vmatmul.mubr.f32.gmra.mrb[0].mxu0 %v284
        %v366 = vpop.f32.mrb[0].mxu0
        %v367 = vadd.f32 %v263, %v366
        %v368 = vpop.f32.mrb[0].mxu0
        %v369 = vadd.f32 %v263, %v368
        %370 = vmatprep.mubr.f32.mxu0 0.0
        %371 = vmatmul.mubr.f32.gmra.mrb[0].mxu0 %v287
        %v372 = vpop.f32.mrb[0].mxu0
        %v373 = vadd.f32 %v268, %v372
        %v374 = vpop.f32.mrb[0].mxu0
        %v375 = vadd.f32 %v268, %v374
        %376 = vmatprep.mubr.f32.mxu0 0.0
        %377 = vmatmul.mubr.f32.gmra.mrb[0].mxu0 %v290
        %v378 = vpop.f32.mrb[0].mxu0
        %v379 = vadd.f32 %v273, %v378
        %v380 = vpop.f32.mrb[0].mxu0
        %v381 = vadd.f32 %v273, %v380
        %382 = vmatprep.mubr.f32.mxu0 0.0
        %383 = vmatmul.mubr.f32.gmra.mrb[0].mxu0 %v293
        %v384 = vpop.f32.mrb[0].mxu0
        %v385 = vadd.f32 %v278, %v384
        %v386 = vpop.f32.mrb[0].mxu0
        %v387 = vadd.f32 %v278, %v386
        %388 = vdwg.mxu0
        %v389 = vmul.f32 %v367, 0.2
        %v390 = vmul.f32 %v369, 0.2
        %v391 = vmul.f32 %v373, 0.2
        %v392 = vmul.f32 %v375, 0.2
        %v393 = vmul.f32 %v379, 0.2
        %v394 = vmul.f32 %v381, 0.2
        %v395 = vmul.f32 %v385, 0.2
        %v396 = vmul.f32 %v387, 0.2
        %v397 = vmax.f32 %v367, %v389
        %v398 = vmax.f32 %v369, %v390
        %v399 = vmax.f32 %v373, %v391
        %v400 = vmax.f32 %v375, %v392
        %v401 = vmax.f32 %v379, %v393
        %v402 = vmax.f32 %v381, %v394
        %v403 = vmax.f32 %v385, %v395
        %v404 = vmax.f32 %v387, %v396
        %v405 = vld [vmem:[%s3] sm:$0xf]
        %v406 = vld [vmem:[%s4] sm:$0xf]
        %408 = vset.pattern.permute.xlu0 0
        %409 = vperm.xlu0 %408, %v406
        %v410 = vpop.permute.xlu0 %409
        %vm412 = vcmask 261120
        %v414 = vsel %vm412, %v405, 0
        %416 = vmatprep.subr.mxu0 %v398
        %417 = vmatpush1.msra.mxu0 %v397
        %418 = vmatprep.subr.mxu0 %v400
        %419 = vmatpush1.msra.mxu0 %v399
        %420 = vmatprep.subr.mxu0 %v402
        %421 = vmatpush1.msra.mxu0 %v401
        %422 = vmatprep.subr.mxu0 %v404
        %423 = vmatpush1.msra.mxu0 %v403
        %424 = vmatprep.subr.mxu0 0.0
        %425 = vmatpush1.msra.mxu0 0.0
        %426 = vmatprep.subr.mxu0 0.0
        %427 = vmatpush1.msra.mxu0 0.0
        %428 = vmatprep.subr.mxu0 0.0
        %429 = vmatpush1.msra.mxu0 0.0
        %430 = vmatprep.subr.mxu0 0.0
        %431 = vmatpush1.msra.mxu0 0.0
        %432 = vmatprep.subr.mxu0 0.0
        %433 = vmatpush1.msra.mxu0 0.0
        %434 = vmatprep.subr.mxu0 0.0
        %435 = vmatpush1.msra.mxu0 0.0
        %436 = vmatprep.subr.mxu0 0.0
        %437 = vmatpush1.msra.mxu0 0.0
        %438 = vmatprep.subr.mxu0 0.0
        %439 = vmatpush1.msra.mxu0 0.0
        %440 = vmatprep.subr.mxu0 0.0
        %441 = vmatpush1.msra.mxu0 0.0
        %442 = vmatprep.subr.mxu0 0.0
        %443 = vmatpush1.msra.mxu0 0.0
        %444 = vmatprep.subr.mxu0 0.0
        %445 = vmatpush1.msra.mxu0 0.0
        %446 = vmatprep.subr.mxu0 0.0
        %447 = vmatpush1.msra.mxu0 0.0
        %448 = vmatprep.subr.mxu0 0.0
        %449 = vmatpush1.msra.mxu0 0.0
        %450 = vmatprep.subr.mxu0 0.0
        %451 = vmatpush1.msra.mxu0 0.0
        %452 = vmatprep.subr.mxu0 0.0
        %453 = vmatpush1.msra.mxu0 0.0
        %454 = vmatprep.subr.mxu0 0.0
        %455 = vmatpush1.msra.mxu0 0.0
        %456 = vmatprep.subr.mxu0 0.0
        %457 = vmatpush1.msra.mxu0 0.0
        %458 = vmatprep.subr.mxu0 0.0
        %459 = vmatpush1.msra.mxu0 0.0
        %460 = vmatprep.subr.mxu0 0.0
        %461 = vmatpush1.msra.mxu0 0.0
        %462 = vmatprep.subr.mxu0 0.0
        %463 = vmatpush1.msra.mxu0 0.0
        %464 = vmatprep.subr.mxu0 0.0
        %465 = vmatpush1.msra.mxu0 0.0
        %466 = vmatprep.subr.mxu0 0.0
        %467 = vmatpush1.msra.mxu0 0.0
        %468 = vmatprep.subr.mxu0 0.0
        %469 = vmatpush1.msra.mxu0 0.0
        %470 = vmatprep.subr.mxu0 0.0
        %471 = vmatpush1.msra.mxu0 0.0
        %472 = vmatprep.subr.mxu0 0.0
        %473 = vmatpush1.msra.mxu0 0.0
        %474 = vmatprep.subr.mxu0 0.0
        %475 = vmatpush1.msra.mxu0 0.0
        %476 = vmatprep.subr.mxu0 0.0
        %477 = vmatpush1.msra.mxu0 0.0
        %478 = vmatprep.subr.mxu0 0.0
        %479 = vmatpush1.msra.mxu0 0.0
        %480 = vmatprep.mubr.f32.mxu0 0.0
        %481 = vmatmul.mubr.f32.gmra.mrb[0].mxu0 %v414
        %v482 = vpop.f32.mrb[0].mxu0
        %v483 = vadd.f32 %v410, %v482
        %v484 = vpop.f32.mrb[0].mxu0
        %v485 = vadd.f32 %v410, %v484
        %486 = vdwg.mxu0
        %v487 = vtanh.pop %v483
        %v488 = vtanh.pop %v485
        %v491 = vcombine.low %v487, %v488
        %493 = vst [vmem:[%s232] sm:$0xff] %v491
        %s494 = sand.u32 %s142, 1
        %s495 = scalar_lea.sflag [#allocation3], %s494
        %s496 = sand.u32 %s142, 1
        %s497 = smul.addr %s496, 8
        %s498 = scalar_lea.vmem [#allocation2], %s497
        // Predicated region
        $region41: #{tpu_custom_call.1} parent=39 // pred_check
          %p499 = pneg %p152
        $region42: #{tpu_custom_call.1} parent=39 // pred_check_branch
          %501 = sbr.rel (%p499) target = $region44
        $region43: #{tpu_custom_call.1} parent=39 // pred_region
          %s503 = ssub.s32 128, 128
          %504 = vsyncadd %s495, %s503
          %s505 = smul.addr %s19, 2
          %s506 = smul.addr %s505, 64
          %s507 = scalar_lea.hbm %s5, %s506
          %s509 = sshll.u32 %s498, 4
          %s510 = int_to_ptr.vmem [resolvable:$true] %s509
          %512 = dma.vmem_to_hbm [thread:$0]  %s510, 128, %s507, %s495
        $region44: #{tpu_custom_call.1} parent=39 // pred_fallthru
          _
      $region40: #{tpu_custom_call.1} parent=5 // pred_fallthru
        _
      %p513 = scmp.le.s32.totalorder 2, %s14
      // Predicated region
      $region45: #{tpu_custom_call.1} parent=5 // pred_check
        %p514 = pneg %p513
      $region46: #{tpu_custom_call.1} parent=5 // pred_check_branch
        %516 = sbr.rel (%p514) target = $region48
      $region47: #{tpu_custom_call.1} parent=5 // pred_region
        %s517 = ssub.s32 %s14, 2
        // Predicated region
        $region49: #{tpu_custom_call.1} parent=47 // pred_check
          %p518 = pneg %p158
        $region50: #{tpu_custom_call.1} parent=47 // pred_check_branch
          %520 = sbr.rel (%p518) target = $region52
        $region51: #{tpu_custom_call.1} parent=47 // pred_region
          %s521 = sand.u32 %s143, 1
          %s522 = scalar_lea.sflag [#allocation3], %s521
          %s523 = sand.u32 %s143, 1
          %s524 = smul.addr %s523, 8
          %s525 = scalar_lea.vmem [#allocation2], %s524
          %526 = dma.done %s522, 128
        $region52: #{tpu_custom_call.1} parent=47 // pred_fallthru
          _
      $region48: #{tpu_custom_call.1} parent=5 // pred_fallthru
        _
    $region6: #{tpu_custom_call.1} parent=1 // loop_footer
      %s18 = sadd.s32 1, %s14
    $region7: #{tpu_custom_call.1} parent=1 // loop_footer_branch
      %13 = sbr.rel target = $region3
    $region8: #{tpu_custom_call.1} parent=1 // loop_exit
      _
    %527 = vsyncpa [#allocation3], 1
    %s528 = scalar_lea.sflag [#allocation3], 1
    %529 = vsyncpa %s528, 1

</llo_original>
